<compile_context>
chip_gen: v5e
topology: v5e:2x2
jax: 0.10.0
libtpu: 0.0.40
codegen_flags: <defaults>
</compile_context>

<pallas_src>
import jax
import jax.numpy as jnp
from jax.experimental import pallas as pl
from jax.experimental.pallas import tpu as pltpu

_SUBLANE = 8
_GRIDLESS_MAX_ROWS = 512   # below this: one whole-array VMEM block, no grid
_TILE_M = 2048             # max M tile for the pipelined/parallel grid path
_MIN_TILES = 4             # aim for >= 4 tiles so pipelining + megacore help


def _round_up(x, m):
    return (x + m - 1) // m * m


def _make_fused_mlp_kernel(n_layers):
    """Kernel args: x_ref, (w_ref, b_ref) * n_layers, o_ref.

    Chains n_layers of (matmul + bias + ReLU) entirely on-chip; intermediate
    activations never leave VMEM.
    """
    def kernel(*refs):
        x_ref, o_ref = refs[0], refs[-1]
        h = x_ref[...]
        for l in range(n_layers):
            w_ref = refs[1 + 2 * l]
            b_ref = refs[2 + 2 * l]
            h = jnp.dot(h, w_ref[...], preferred_element_type=jnp.float32)
            h = jnp.maximum(h + b_ref[...], 0.0)   # (1, N) bias broadcasts
        o_ref[...] = h.astype(o_ref.dtype)
    return kernel


def init_mlp_params(key, d_hidden, dtype=jnp.float32):
    """nn.Linear default init (uniform +/- 1/sqrt(fan_in)).

    Weights stored as [in, out] (transpose of PyTorch), bias as (1, out) so it
    broadcasts over rows inside the kernel.  No padding needed: feature dims
    are passed at full array width (legal BlockSpec last dims).
    """
    params = []
    for i in range(1, len(d_hidden)):
        fan_in, fan_out = d_hidden[i - 1], d_hidden[i]
        key, kw, kb = jax.random.split(key, 3)
        bound = 1.0 / (fan_in ** 0.5)
        w = jax.random.uniform(kw, (fan_in, fan_out), dtype, -bound, bound)
        b = jax.random.uniform(kb, (1, fan_out), dtype, -bound, bound)
        params.append((w, b))
    return params


def mlp_forward(x, params):
    """Fused MLP forward: relu(...relu(x @ w1 + b1)... @ wn + bn).

    x: [M, d_in] float32 -> [M, d_out] float32, in a single pallas_call,
    with zero wrapper-side copies (no pad, no slice).
    """
    M, K = x.shape
    n_layers = len(params)
    N = params[-1][0].shape[1]
    kernel = _make_fused_mlp_kernel(n_layers)
    flat_params = [t for wb in params for t in wb]

    if M <= _GRIDLESS_MAX_ROWS:
        # Small batch: one whole-array VMEM block, no grid / pipeline overhead.
        n_in = 1 + len(flat_params)
        return pl.pallas_call(
            kernel,
            out_shape=jax.ShapeDtypeStruct((M, N), x.dtype),
            in_specs=[pl.BlockSpec(memory_space=pltpu.MemorySpace.VMEM)] * n_in,
            out_specs=pl.BlockSpec(memory_space=pltpu.MemorySpace.VMEM),
        )(x, *flat_params)

    # Large batch: tile only M (ragged last tile handled by Pallas); weights
    # and biases stay VMEM-resident across grid steps (constant index_map);
    # M axis is "parallel" so it can be sharded across TensorCores.
    tm = min(_TILE_M, _round_up(pl.cdiv(M, _MIN_TILES), _SUBLANE))
    grid = (pl.cdiv(M, tm),)
    in_specs = [pl.BlockSpec((tm, K), lambda i: (i, 0))]
    for w, b in params:
        in_specs.append(pl.BlockSpec(w.shape, lambda i: (0, 0)))
        in_specs.append(pl.BlockSpec(b.shape, lambda i: (0, 0)))
    return pl.pallas_call(
        kernel,
        out_shape=jax.ShapeDtypeStruct((M, N), x.dtype),
        grid=grid,
        in_specs=in_specs,
        out_specs=pl.BlockSpec((tm, N), lambda i: (i, 0)),
        compiler_params=pltpu.CompilerParams(
            dimension_semantics=("parallel",)),
    )(x, *flat_params)


def mlp_forward_ref(x, params):
    # Pure-JAX reference for correctness checking.
    for w, b in params:
        x = jnp.maximum(x @ w + b, 0.0)
    return x


if __name__ == "__main__":
    d_hidden = [32, 64, 32]

    key = jax.random.PRNGKey(0)
    key, kx_small, kx_big = jax.random.split(key, 3)
    params = init_mlp_params(key, d_hidden)

    # Small batch -> gridless whole-array VMEM path.
    x_small = jax.random.normal(kx_small, (8, d_hidden[0]), jnp.float32)
    y_small = jax.block_until_ready(mlp_forward(x_small, params))
    y_small_ref = mlp_forward_ref(x_small, params)
    assert y_small.shape == (8, d_hidden[-1])
    assert jnp.allclose(y_small, y_small_ref, atol=1e-5, rtol=1e-5)

    # Larger batch -> pipelined/parallel grid path with a ragged last tile.
    x_big = jax.random.normal(kx_big, (1000, d_hidden[0]), jnp.float32)
    y_big = jax.block_until_ready(mlp_forward(x_big, params))
    y_big_ref = mlp_forward_ref(x_big, params)
    assert y_big.shape == (1000, d_hidden[-1])
    assert jnp.allclose(y_big, y_big_ref, atol=1e-5, rtol=1e-5)

    print("KERNEL_OK")
</pallas_src>

<mosaic_0001>
module attributes {stable_mosaic.version = 11 : i64} {
  func.func @kernel(%arg0: memref<8x32xf32, #tpu.memory_space<vmem>>, %arg1: memref<32x64xf32, #tpu.memory_space<vmem>>, %arg2: memref<1x64xf32, #tpu.memory_space<vmem>>, %arg3: memref<64x32xf32, #tpu.memory_space<vmem>>, %arg4: memref<1x32xf32, #tpu.memory_space<vmem>>, %arg5: memref<8x32xf32, #tpu.memory_space<vmem>>) attributes {dimension_semantics = [], scalar_prefetch = 0 : i64, scratch_operands = 0 : i64, tpu.core_type = #tpu.core_type<tc>} {
    %c0 = arith.constant 0 : index
    %c0_0 = arith.constant 0 : index
    %0 = vector.load %arg0[%c0, %c0_0] : memref<8x32xf32, #tpu.memory_space<vmem>>, vector<8x32xf32>
    %c0_1 = arith.constant 0 : index
    %c0_2 = arith.constant 0 : index
    %1 = vector.load %arg1[%c0_1, %c0_2] : memref<32x64xf32, #tpu.memory_space<vmem>>, vector<32x64xf32>
    %cst = arith.constant dense<0.000000e+00> : vector<8x64xf32>
    %2 = tpu.matmul %0, %1, %cst {dimension_numbers = #tpu.dot_dimension_numbers<[1], [0], [0], [1], [0, 0, 1, 1], [], []>} : vector<8x32xf32>, vector<32x64xf32>, vector<8x64xf32> -> vector<8x64xf32>
    %c0_3 = arith.constant 0 : index
    %c0_4 = arith.constant 0 : index
    %3 = vector.load %arg2[%c0_3, %c0_4] : memref<1x64xf32, #tpu.memory_space<vmem>>, vector<1x64xf32>
    %4 = vector.broadcast %3 : vector<1x64xf32> to vector<8x64xf32>
    %5 = arith.addf %2, %4 : vector<8x64xf32>
    %cst_5 = arith.constant 0.000000e+00 : f32
    %6 = vector.broadcast %cst_5 : f32 to vector<8x64xf32>
    %7 = arith.maximumf %5, %6 : vector<8x64xf32>
    %c0_6 = arith.constant 0 : index
    %c0_7 = arith.constant 0 : index
    %8 = vector.load %arg3[%c0_6, %c0_7] : memref<64x32xf32, #tpu.memory_space<vmem>>, vector<64x32xf32>
    %cst_8 = arith.constant dense<0.000000e+00> : vector<8x32xf32>
    %9 = tpu.matmul %7, %8, %cst_8 {dimension_numbers = #tpu.dot_dimension_numbers<[1], [0], [0], [1], [0, 0, 1, 1], [], []>} : vector<8x64xf32>, vector<64x32xf32>, vector<8x32xf32> -> vector<8x32xf32>
    %c0_9 = arith.constant 0 : index
    %c0_10 = arith.constant 0 : index
    %10 = vector.load %arg4[%c0_9, %c0_10] : memref<1x32xf32, #tpu.memory_space<vmem>>, vector<1x32xf32>
    %11 = vector.broadcast %10 : vector<1x32xf32> to vector<8x32xf32>
    %12 = arith.addf %9, %11 : vector<8x32xf32>
    %cst_11 = arith.constant 0.000000e+00 : f32
    %13 = vector.broadcast %cst_11 : f32 to vector<8x32xf32>
    %14 = arith.maximumf %12, %13 : vector<8x32xf32>
    %c0_12 = arith.constant 0 : index
    %c0_13 = arith.constant 0 : index
    %15 = vector.load %arg5[%c0_12, %c0_13] : memref<8x32xf32, #tpu.memory_space<vmem>>, vector<8x32xf32>
    tpu.vector_store %arg5[%c0_12, %c0_13], %14 {strides = array<i32>} : memref<8x32xf32, #tpu.memory_space<vmem>>, vector<8x32xf32>,
    return
  }
}

</mosaic_0001>

<llo_original>
// kernel: tpu_custom_call.1
$region0: #{tpu_custom_call.1}
  #allocation0 [shape = 'u32[]', space=smem, size = 0x4, offset = 0x4, fixed_abs, tag = 'smem constant byte address 0x4 - core index']
  #allocation1 [shape = 'u32[72,128]{1,0:T(1,128)}', space=vmem, size = 0x9000, scoped, tag = 'internal scratch']
  %s0 = inlined_call_operand.vmem [shape: f32[8,32], index: 0, kind: input, shape index: {}]
  %s1 = inlined_call_operand.vmem [shape: f32[32,64], index: 1, kind: input, shape index: {}]
  %s2 = inlined_call_operand.vmem [shape: f32[1,64], index: 2, kind: input, shape index: {}]
  %s3 = inlined_call_operand.vmem [shape: f32[64,32], index: 3, kind: input, shape index: {}]
  %s4 = inlined_call_operand.vmem [shape: f32[1,32], index: 4, kind: input, shape index: {}]
  %s5 = inlined_call_operand.hbm [shape: f32[8,32], index: 5, kind: output, shape index: {}]
  %s6 = sld [smem:[#allocation0]]
  $region30: #{tpu_custom_call.1} parent=0
    _
  %s8 = ssub.s32 1, %s6
  %s9 = scalar_select 0, %s8, %s6
  $region1: #{tpu_custom_call.1} parent=0
    #allocation2 [shape = 'u8[4096]{0}', space=vmem, size = 0x1000, scoped, tag = 'output window, operand 0, single buffered']
    #allocation3 [shape = 's32[1]{0}', space=sflag, size = 0x4, scoped, tag = 'scoped memory for tpu_custom_call.1']
    %10 = vsyncpa [#allocation3], 0
    // Predicated region
    $region2: #{tpu_custom_call.1} parent=1 // pred_check
      _
    $region3: #{tpu_custom_call.1} parent=1 // pred_check_branch
      %12 = sbr.rel (0) target = $region5
    $region4: #{tpu_custom_call.1} parent=1 // pred_region
      _
    $region5: #{tpu_custom_call.1} parent=1 // pred_fallthru
      _
    // Predicated region
    $region6: #{tpu_custom_call.1} parent=1 // pred_check
      _
    $region7: #{tpu_custom_call.1} parent=1 // pred_check_branch
      %14 = sbr.rel (0) target = $region9
    $region8: #{tpu_custom_call.1} parent=1 // pred_region
      _
    $region9: #{tpu_custom_call.1} parent=1 // pred_fallthru
      _
    // Predicated region
    $region10: #{tpu_custom_call.1} parent=1 // pred_check
      _
    $region11: #{tpu_custom_call.1} parent=1 // pred_check_branch
      %16 = sbr.rel (0) target = $region13
    $region12: #{tpu_custom_call.1} parent=1 // pred_region
      _
    $region13: #{tpu_custom_call.1} parent=1 // pred_fallthru
      _
    // Predicated region
    $region14: #{tpu_custom_call.1} parent=1 // pred_check
      _
    $region15: #{tpu_custom_call.1} parent=1 // pred_check_branch
      %18 = sbr.rel (0) target = $region17
    $region16: #{tpu_custom_call.1} parent=1 // pred_region
      _
    $region17: #{tpu_custom_call.1} parent=1 // pred_fallthru
      _
    // Predicated region
    $region18: #{tpu_custom_call.1} parent=1 // pred_check
      _
    $region19: #{tpu_custom_call.1} parent=1 // pred_check_branch
      %20 = sbr.rel (0) target = $region21
    $region20: #{tpu_custom_call.1} parent=1 // pred_region
      _
    $region21: #{tpu_custom_call.1} parent=1 // pred_fallthru
      _
    %v21 = vld [vmem:[%s0] sm:$0xff]
    %v22 = vld [vmem:[%s1] sm:$0xff]
    %v23 = vld [vmem:[%s1 + $0x8] sm:$0xff]
    %v24 = vld [vmem:[%s1 + $0x10] sm:$0xff]
    %v25 = vld [vmem:[%s1 + $0x18] sm:$0xff]
    %v26 = vld [vmem:[%s2] sm:$0x1]
    %v28 = vperm.slane %v26, 0
    %vm30 = vcmask 261120
    %v32 = vsel %vm30, %v21, 0
    %34 = vmatpush.msra.mxu0 0.0
    %35 = vmatpush.msra.mxu0 0.0
    %36 = vmatpush.msra.mxu0 0.0
    %37 = vmatpush.msra.mxu0 0.0
    %38 = vmatpush.msra.mxu0 0.0
    %39 = vmatpush.msra.mxu0 0.0
    %40 = vmatpush.msra.mxu0 0.0
    %41 = vmatpush.msra.mxu0 0.0
    %42 = vmatpush.msra.mxu0 0.0
    %43 = vmatpush.msra.mxu0 0.0
    %44 = vmatpush.msra.mxu0 0.0
    %45 = vmatpush.msra.mxu0 0.0
    %46 = vmatpush.msra.mxu0 %v25
    %47 = vmatpush.msra.mxu0 %v24
    %48 = vmatpush.msra.mxu0 %v23
    %49 = vmatpush.msra.mxu0 %v22
    %50 = vmatmul.f32.gmra.mxu0 %v32
    %v51 = vpop.f32.mrf.mxu0
    %v52 = vadd.f32 %v28, %v51
    %53 = vdwg.mxu0
    %v54 = vmax.f32 %v52, 0.0
    %v55 = vld [vmem:[%s3] sm:$0xff]
    %v56 = vld [vmem:[%s3 + $0x8] sm:$0xff]
    %v57 = vld [vmem:[%s3 + $0x10] sm:$0xff]
    %v58 = vld [vmem:[%s3 + $0x18] sm:$0xff]
    %v59 = vld [vmem:[%s3 + $0x20] sm:$0xff]
    %v60 = vld [vmem:[%s3 + $0x28] sm:$0xff]
    %v61 = vld [vmem:[%s3 + $0x30] sm:$0xff]
    %v62 = vld [vmem:[%s3 + $0x38] sm:$0xff]
    %v63 = vld [vmem:[%s4] sm:$0x1]
    %v65 = vperm.slane %v63, 0
    %vm67 = vcmask 523264
    %v69 = vsel %vm67, %v54, 0
    %71 = vmatpush.msra.mxu0 0.0
    %72 = vmatpush.msra.mxu0 0.0
    %73 = vmatpush.msra.mxu0 0.0
    %74 = vmatpush.msra.mxu0 0.0
    %75 = vmatpush.msra.mxu0 0.0
    %76 = vmatpush.msra.mxu0 0.0
    %77 = vmatpush.msra.mxu0 0.0
    %78 = vmatpush.msra.mxu0 0.0
    %79 = vmatpush.msra.mxu0 %v62
    %80 = vmatpush.msra.mxu0 %v61
    %81 = vmatpush.msra.mxu0 %v60
    %82 = vmatpush.msra.mxu0 %v59
    %83 = vmatpush.msra.mxu0 %v58
    %84 = vmatpush.msra.mxu0 %v57
    %85 = vmatpush.msra.mxu0 %v56
    %86 = vmatpush.msra.mxu0 %v55
    %87 = vmatmul.f32.gmra.mxu0 %v69
    %v88 = vpop.f32.mrf.mxu0
    %v89 = vadd.f32 %v65, %v88
    %90 = vdwg.mxu0
    %v91 = vmax.f32 %v89, 0.0
    %92 = vst.msk [vmem:[#allocation2] sm:$0xff] %vm30, %v91
    // Predicated region
    $region22: #{tpu_custom_call.1} parent=1 // pred_check
      _
    $region23: #{tpu_custom_call.1} parent=1 // pred_check_branch
      %94 = sbr.rel (0) target = $region25
    $region24: #{tpu_custom_call.1} parent=1 // pred_region
      %96 = vsyncadd [#allocation3], 0
      %s98 = sshll.u32 [#allocation2], 4
      %s99 = int_to_ptr.vmem [resolvable:$true] %s98
      %s100 = sshll.u32 %s5, 4
      %s101 = int_to_ptr.hbm [resolvable:$true] %s100
      %103 = dma.vmem_to_hbm [thread:$0]  %s99, 128, %s101, [#allocation3]
    $region25: #{tpu_custom_call.1} parent=1 // pred_fallthru
      _
    // Predicated region
    $region26: #{tpu_custom_call.1} parent=1 // pred_check
      _
    $region27: #{tpu_custom_call.1} parent=1 // pred_check_branch
      %105 = sbr.rel (0) target = $region29
    $region28: #{tpu_custom_call.1} parent=1 // pred_region
      %107 = dma.done [#allocation3], 128
    $region29: #{tpu_custom_call.1} parent=1 // pred_fallthru
      _
    %108 = vsyncpa [#allocation3], 1

</llo_original>
